<compile_context>
chip_gen: v7x
topology: tpu7x:2x2x1
jax: 0.10.0
libtpu: 0.0.40
codegen_flags: <defaults>
</compile_context>

<pallas_src>
import functools

import jax
import jax.numpy as jnp
from jax.experimental import pallas as pl
from jax.experimental.pallas import tpu as pltpu

LATENT_DIM = 32
EPS = 1e-18
_MAX_BLOCK_ROWS = 4096   # (4096, 32) f32 lane-pads to ~2 MiB per pipeline buffer.


def _block_prob(ge_ref, te_ref, w_ref, b_ref):
    """Shared head for one (TB, D) block: f32 logits + sigmoid -> (1, TB)."""
    tb = ge_ref.shape[0]
    ge = ge_ref[...].astype(jnp.float32)            # (TB, D)  upcast if bf16 input
    te = te_ref[...].astype(jnp.float32)            # (TB, D)
    wg = w_ref[0:1, :].astype(jnp.float32)          # (1, D)   weight[:, :D]
    wt = w_ref[1:2, :].astype(jnp.float32)          # (1, D)   weight[:, D:]
    s = ge * wg + te * wt                           # VPU broadcast mul-add
    logit = jnp.sum(s, axis=-1).reshape(1, tb) + b_ref[0]   # XLU lane reduce
    return jax.nn.sigmoid(logit)                    # EUP


def _prob_kernel(ge_ref, te_ref, w_ref, b_ref, prob_ref):
    prob_ref[...] = _block_prob(ge_ref, te_ref, w_ref, b_ref)


def _loss_kernel(ge_ref, te_ref, w_ref, b_ref, lab_ref, loss_ref, *, batch_size):
    tb = ge_ref.shape[0]
    prob = _block_prob(ge_ref, te_ref, w_ref, b_ref)          # (1, TB)
    lab = lab_ref[...]                                         # (1, TB)
    loss = (-lab * jnp.log(prob + EPS)
            - (1.0 - lab) * jnp.log(1.0 - prob + EPS))
    # Zero the ragged tail of the final block so the wrapper's sum / B is exact.
    row = (pl.program_id(0) * tb
           + jax.lax.broadcasted_iota(jnp.int32, (1, tb), 1))
    loss_ref[...] = jnp.where(row < batch_size, loss, 0.0)


def _pick_block_rows(batch, max_block):
    """Rows per block: exact full array for small batches; otherwise ~two equal
    128-aligned blocks (v7x 2-TC sharding), capped at the VMEM-comfortable max."""
    if batch < 256:
        return batch                               # one exact block, no raggedness
    half = ((pl.cdiv(batch, 2) + 127) // 128) * 128
    return min(max_block, half)


def gnn_binary_forward(graph_embed, node_embed, target_idx, weight, bias,
                       label=None, *, max_block=_MAX_BLOCK_ROWS):
    """Pallas implementation of GnnBinary.forward (has_anchor=True)."""
    B, D = graph_embed.shape
    assert weight.shape == (1, 2 * D) and bias.shape == (1,)

    # Anchor gather outside the kernel (native dtype, lane-dense rows).
    # NOTE: the original PyTorch appends g.target_idx[0] WITHOUT the node offset;
    # we reproduce that verbatim (target_idx indexes the concatenated node_embed).
    te = jnp.take(node_embed, target_idx.astype(jnp.int32), axis=0)    # (B, D)
    w2 = weight.astype(jnp.float32).reshape(2, D)                      # [wg; wt]
    b = bias.astype(jnp.float32).reshape(1)

    block_b = _pick_block_rows(B, max_block)
    nb = pl.cdiv(B, block_b)

    row_spec = pl.BlockSpec((block_b, D), lambda i: (i, 0))            # embeddings
    vec_spec = pl.BlockSpec((1, block_b), lambda i: (0, i))            # labels / out
    w_spec = pl.BlockSpec((2, D), lambda i: (0, 0))                    # replicated
    b_spec = pl.BlockSpec(memory_space=pltpu.MemorySpace.SMEM)         # scalar bias
    params = pltpu.CompilerParams(dimension_semantics=("parallel",))

    if label is None:
        prob = pl.pallas_call(
            _prob_kernel,
            grid=(nb,),
            in_specs=[row_spec, row_spec, w_spec, b_spec],
            out_specs=vec_spec,
            out_shape=jax.ShapeDtypeStruct((1, B), jnp.float32),
            compiler_params=params,
        )(graph_embed, te, w2, b)
        return prob.reshape(B, 1)

    lab = label.astype(jnp.float32).reshape(1, B)
    loss_rows = pl.pallas_call(
        functools.partial(_loss_kernel, batch_size=B),
        grid=(nb,),
        in_specs=[row_spec, row_spec, w_spec, b_spec, vec_spec],
        out_specs=vec_spec,
        out_shape=jax.ShapeDtypeStruct((1, B), jnp.float32),
        compiler_params=params,
    )(graph_embed, te, w2, b, lab)
    # Ragged rows were zeroed in-kernel (and masked at write-back): sum/B is exact.
    return jnp.sum(loss_rows) / B


def _reference(graph_embed, node_embed, target_idx, weight, bias, label):
    """Pure-JAX mirror of the PyTorch forward, for checking."""
    target_embed = node_embed[target_idx]
    state = jnp.concatenate([graph_embed, target_embed], axis=1)
    logits = state @ weight.T + bias
    prob = jax.nn.sigmoid(logits)
    y = label.reshape(prob.shape)
    loss = -y * jnp.log(prob + EPS) - (1.0 - y) * jnp.log(1.0 - prob + EPS)
    return prob, jnp.mean(loss)


if __name__ == "__main__":
    D = LATENT_DIM

    def run_case(B, N, max_block, seed):
        key = jax.random.PRNGKey(seed)
        k_ge, k_ne, k_idx, k_w, k_b, k_lab = jax.random.split(key, 6)

        graph_embed = jax.random.normal(k_ge, (B, D), dtype=jnp.float32)
        node_embed = jax.random.normal(k_ne, (N, D), dtype=jnp.float32)
        target_idx = jax.random.randint(k_idx, (B,), 0, N, dtype=jnp.int32)

        # nn.Linear(2*latent_dim, 1): weight (1, 2D), bias (1,), U(-1/sqrt(in), 1/sqrt(in))
        bound = 1.0 / jnp.sqrt(jnp.float32(2 * D))
        weight = jax.random.uniform(k_w, (1, 2 * D), jnp.float32, -bound, bound)
        bias = jax.random.uniform(k_b, (1,), jnp.float32, -bound, bound)
        label = jax.random.bernoulli(k_lab, 0.5, (B,)).astype(jnp.float32)

        # Inference mode (no label) -> probabilities
        prob = jax.block_until_ready(
            gnn_binary_forward(graph_embed, node_embed, target_idx, weight, bias,
                               max_block=max_block))
        # Training mode (label given) -> mean BCE loss
        loss = jax.block_until_ready(
            gnn_binary_forward(graph_embed, node_embed, target_idx, weight, bias,
                               label, max_block=max_block))

        prob_ref, loss_ref = _reference(graph_embed, node_embed, target_idx,
                                        weight, bias, label)
        assert prob.shape == (B, 1)
        assert jnp.allclose(prob, prob_ref, atol=1e-5, rtol=1e-5)
        assert jnp.allclose(loss, loss_ref, atol=1e-5, rtol=1e-5)

    # Small batch: single exact full-array block, grid=(1,).
    run_case(B=4, N=40, max_block=_MAX_BLOCK_ROWS, seed=0)
    # Larger batch: multi-block parallel grid with a ragged final block (no padding).
    run_case(B=300, N=1000, max_block=128, seed=1)

    print("KERNEL_OK")
</pallas_src>

<mosaic_0001>
module attributes {stable_mosaic.version = 11 : i64} {
  func.func @_prob_kernel(%arg0: i32, %arg1: memref<4x32xf32, #tpu.memory_space<vmem>>, %arg2: memref<4x32xf32, #tpu.memory_space<vmem>>, %arg3: memref<2x32xf32, #tpu.memory_space<vmem>>, %arg4: memref<1xf32, #tpu.memory_space<smem>>, %arg5: memref<1x4xf32, #tpu.memory_space<vmem>>) attributes {dimension_semantics = [#tpu.dimension_semantics<parallel>], iteration_bounds = array<i64: 1>, scalar_prefetch = 0 : i64, scratch_operands = 0 : i64, tpu.core_type = #tpu.core_type<tc>, window_params = [{transform_indices = @transform_0, window_bounds = array<i64: 4, 32>}, {transform_indices = @transform_1, window_bounds = array<i64: 4, 32>}, {pipeline_mode = #tpu.pipeline_mode<synchronous>, transform_indices = @transform_2, window_bounds = array<i64: 2, 32>}, {transform_indices = @transform_3, window_bounds = array<i64: 1>}, {transform_indices = @transform_4, window_bounds = array<i64: 1, 4>}]} {
    %c0 = arith.constant 0 : index
    %c0_0 = arith.constant 0 : index
    %0 = vector.load %arg1[%c0, %c0_0] : memref<4x32xf32, #tpu.memory_space<vmem>>, vector<4x32xf32>
    %c0_1 = arith.constant 0 : index
    %c0_2 = arith.constant 0 : index
    %1 = vector.load %arg2[%c0_1, %c0_2] : memref<4x32xf32, #tpu.memory_space<vmem>>, vector<4x32xf32>
    %c0_3 = arith.constant 0 : index
    %c0_4 = arith.constant 0 : index
    %2 = vector.load %arg3[%c0_3, %c0_4] : memref<2x32xf32, #tpu.memory_space<vmem>>, vector<1x32xf32>
    %c1 = arith.constant 1 : index
    %c0_5 = arith.constant 0 : index
    %3 = vector.load %arg3[%c1, %c0_5] : memref<2x32xf32, #tpu.memory_space<vmem>>, vector<1x32xf32>
    %4 = vector.broadcast %2 : vector<1x32xf32> to vector<4x32xf32>
    %5 = arith.mulf %0, %4 : vector<4x32xf32>
    %6 = vector.broadcast %3 : vector<1x32xf32> to vector<4x32xf32>
    %7 = arith.mulf %1, %6 : vector<4x32xf32>
    %8 = arith.addf %5, %7 : vector<4x32xf32>
    %cst = arith.constant dense<0.000000e+00> : vector<4xf32>
    %9 = vector.multi_reduction <add>, %8, %cst [1] : vector<4x32xf32> to vector<4xf32>
    %10 = vector.shape_cast %9 : vector<4xf32> to vector<1x4xf32>
    %c0_6 = arith.constant 0 : index
    %11 = memref.load %arg4[%c0_6] : memref<1xf32, #tpu.memory_space<smem>>
    %12 = vector.broadcast %11 : f32 to vector<1x4xf32>
    %13 = arith.addf %10, %12 : vector<1x4xf32>
    %14 = arith.negf %13 : vector<1x4xf32>
    %15 = math.exp %14 : vector<1x4xf32>
    %cst_7 = arith.constant 1.000000e+00 : f32
    %16 = vector.broadcast %cst_7 : f32 to vector<1x4xf32>
    %17 = arith.addf %16, %15 : vector<1x4xf32>
    %18 = arith.divf %16, %17 : vector<1x4xf32>
    %c0_8 = arith.constant 0 : index
    %c0_9 = arith.constant 0 : index
    %19 = vector.load %arg5[%c0_8, %c0_9] : memref<1x4xf32, #tpu.memory_space<vmem>>, vector<1x4xf32>
    tpu.vector_store %arg5[%c0_8, %c0_9], %18 {strides = array<i32>} : memref<1x4xf32, #tpu.memory_space<vmem>>, vector<1x4xf32>,
    return
  }
  func.func @transform_0(%arg0: i32) -> (i32, i32) {
    %c0_i32 = arith.constant 0 : i32
    %c0_i32_0 = arith.constant 0 : i32
    return %arg0, %c0_i32 : i32, i32
  }
  func.func @transform_1(%arg0: i32) -> (i32, i32) {
    %c0_i32 = arith.constant 0 : i32
    %c0_i32_0 = arith.constant 0 : i32
    return %arg0, %c0_i32 : i32, i32
  }
  func.func @transform_2(%arg0: i32) -> (i32, i32) {
    %c0_i32 = arith.constant 0 : i32
    %c0_i32_0 = arith.constant 0 : i32
    %c0_i32_1 = arith.constant 0 : i32
    return %c0_i32, %c0_i32_0 : i32, i32
  }
  func.func @transform_3(%arg0: i32) -> i32 {
    %c0_i32 = arith.constant 0 : i32
    %c0_i32_0 = arith.constant 0 : i32
    return %c0_i32 : i32
  }
  func.func @transform_4(%arg0: i32) -> (i32, i32) {
    %c0_i32 = arith.constant 0 : i32
    %c0_i32_0 = arith.constant 0 : i32
    return %c0_i32, %arg0 : i32, i32
  }
}

</mosaic_0001>

<llo_original>
// kernel: tpu_custom_call.1
$region0: #{tpu_custom_call.1}
  #allocation0 [shape = 'u32[]', space=smem, size = 0x4, offset = 0x4, fixed_abs, tag = 'smem constant byte address 0x4 - core index']
  #allocation1 [shape = 'u32[144,128]{1,0:T(1,128)}', space=vmem, size = 0x12000, scoped, tag = 'internal scratch']
  #allocation2 [shape = 'f32[1]{0:T(128)S(6)}', space=smem, size = 0x200, scoped, tag = 'scoped memory for tpu_custom_call.1']
  %s0 = inlined_call_operand.hbm [shape: f32[4,32], index: 0, kind: input, shape index: {}]
  %s1 = inlined_call_operand.vmem [shape: f32[4,32], index: 1, kind: input, shape index: {}]
  %s2 = inlined_call_operand.vmem [shape: f32[2,32], index: 2, kind: input, shape index: {}]
  %s3 = inlined_call_operand.<no memory space> [shape: f32[1], index: 3, kind: input, shape index: {}]
  %s4 = inlined_call_operand.hbm [shape: f32[1,4], index: 4, kind: output, shape index: {}]
  %s5 = sld [smem:[#allocation0]]
  $region30: #{tpu_custom_call.1} parent=0
    _
  %s7 = ssub.s32 1, %s5
  %s8 = scalar_select 0, %s7, %s5
  %9 = sst [smem:[#allocation2]] %s3
  $region1: #{tpu_custom_call.1} parent=0
    #allocation3 [shape = 'u8[2048]{0}', space=vmem, size = 0x800, scoped, tag = 'input window, operand 0, single buffered']
    #allocation4 [shape = 's32[1]{0}', space=sflag, size = 0x4, scoped, tag = 'scoped memory for tpu_custom_call.1']
    #allocation5 [shape = 's32[1]{0}', space=sflag, size = 0x4, scoped, tag = 'scoped memory for tpu_custom_call.1']
    #allocation6 [shape = 'u8[512]{0}', space=vmem, size = 0x400, scoped, tag = 'output window, operand 0, single buffered']
    %10 = vsyncpa [#allocation4], 0
    %11 = vsyncpa [#allocation5], 0
    // Predicated region
    $region2: #{tpu_custom_call.1} parent=1 // pred_check
      _
    $region3: #{tpu_custom_call.1} parent=1 // pred_check_branch
      %13 = sbr.rel (0) target = $region5
    $region4: #{tpu_custom_call.1} parent=1 // pred_region
      %s15 = ssub.s32 64, 64
      %16 = vsyncadd [#allocation4], %s15
      %s18 = sshll.u32 [#allocation3], 4
      %s19 = int_to_ptr.vmem [resolvable:$true] %s18
      %21 = dma.hbm_to_vmem [thread:$0]  %s0, 64, %s19, [#allocation4]
    $region5: #{tpu_custom_call.1} parent=1 // pred_fallthru
      _
    // Predicated region
    $region6: #{tpu_custom_call.1} parent=1 // pred_check
      _
    $region7: #{tpu_custom_call.1} parent=1 // pred_check_branch
      %23 = sbr.rel (0) target = $region9
    $region8: #{tpu_custom_call.1} parent=1 // pred_region
      _
    $region9: #{tpu_custom_call.1} parent=1 // pred_fallthru
      _
    // Predicated region
    $region10: #{tpu_custom_call.1} parent=1 // pred_check
      _
    $region11: #{tpu_custom_call.1} parent=1 // pred_check_branch
      %25 = sbr.rel (0) target = $region13
    $region12: #{tpu_custom_call.1} parent=1 // pred_region
      _
    $region13: #{tpu_custom_call.1} parent=1 // pred_fallthru
      _
    // Predicated region
    $region14: #{tpu_custom_call.1} parent=1 // pred_check
      _
    $region15: #{tpu_custom_call.1} parent=1 // pred_check_branch
      %27 = sbr.rel (0) target = $region17
    $region16: #{tpu_custom_call.1} parent=1 // pred_region
      _
    $region17: #{tpu_custom_call.1} parent=1 // pred_fallthru
      _
    // Predicated region
    $region18: #{tpu_custom_call.1} parent=1 // pred_check
      _
    $region19: #{tpu_custom_call.1} parent=1 // pred_check_branch
      %29 = sbr.rel (0) target = $region21
    $region20: #{tpu_custom_call.1} parent=1 // pred_region
      %30 = dma.done [#allocation4], 64
    $region21: #{tpu_custom_call.1} parent=1 // pred_fallthru
      _
    %v31 = vld [vmem:[#allocation3] sm:$0xf]
    %v32 = vld [vmem:[%s1] sm:$0xf]
    %v33 = vld [vmem:[%s2] sm:$0x1]
    %v34 = vld [vmem:[%s2 + $0x1] sm:$0x1]
    %v35 = vlaneseq
    %v36 = vshrl.u32 %v35, 7
    %v37 = vsub.s32 0, %v36
    %v38 = vrot.slane %v33, %v37
    %v39 = vmul.f32 %v31, %v38
    %v40 = vlaneseq
    %v41 = vshrl.u32 %v40, 7
    %v42 = vsub.s32 0, %v41
    %v43 = vrot.slane %v34, %v42
    %v44 = vmul.f32 %v32, %v43
    %v45 = vadd.f32 %v39, %v44
    %vm46 = vcmask 257024
    %v47 = vsel %vm46, %v45, 0.0
    %48 = vadd.xlane.f32.xlu0 %v47
    %v49 = vpop.xlane.xlu0 %48
    %s50 = sld [smem:[#allocation2]]
    %v51 = vstv %s50
    %v52 = vadd.f32 %v49, %v51
    %v53 = vxor.u32 %v52, 2147483648
    %v54 = vmul.f32 %v53, 1.442695
    %v55 = vpow.pop %v54
    %v56 = vadd.f32 %v55, 1.0
    %v57 = vrcp.pop %v56
    %v58 = vmul.f32 1.0, %v57
    %v60 = vlaneseq
    %v61 = vand.u32 %v60, 127
    %v62 = vlaneseq
    %v63 = vshrl.u32 %v62, 7
    %v64 = vsub.s32 %v61, %v63
    %v65 = vrot.slane %v58, %v64
    %vm67 = vcmask 24576
    %68 = vst.msk [vmem:[#allocation6] sm:$0x1] %vm67, %v65
    // Predicated region
    $region22: #{tpu_custom_call.1} parent=1 // pred_check
      _
    $region23: #{tpu_custom_call.1} parent=1 // pred_check_branch
      %70 = sbr.rel (0) target = $region25
    $region24: #{tpu_custom_call.1} parent=1 // pred_region
      %s72 = ssub.s32 16, 16
      %73 = vsyncadd [#allocation5], %s72
      %s75 = sshll.u32 [#allocation6], 4
      %s76 = int_to_ptr.vmem [resolvable:$true] %s75
      %78 = dma.vmem_to_hbm [thread:$0]  %s76, 16, %s4, [#allocation5]
    $region25: #{tpu_custom_call.1} parent=1 // pred_fallthru
      _
    // Predicated region
    $region26: #{tpu_custom_call.1} parent=1 // pred_check
      _
    $region27: #{tpu_custom_call.1} parent=1 // pred_check_branch
      %80 = sbr.rel (0) target = $region29
    $region28: #{tpu_custom_call.1} parent=1 // pred_region
      %81 = dma.done [#allocation5], 16
    $region29: #{tpu_custom_call.1} parent=1 // pred_fallthru
      _
    %82 = vsyncpa [#allocation4], 1
    %83 = vsyncpa [#allocation5], 1

</llo_original>
